<compile_context>
chip_gen: v7x
topology: tpu7x:2x2x1
jax: 0.10.0
libtpu: 0.0.40
codegen_flags: <defaults>
</compile_context>

<pallas_src>
import functools

import jax
import jax.numpy as jnp
import numpy as np
from jax.experimental import pallas as pl
from jax.experimental.pallas import tpu as pltpu

try:  # polynomial LSA; pure-numpy fallback below if scipy is unavailable
    from scipy.optimize import linear_sum_assignment as _scipy_lsa
except Exception:  # pragma: no cover
    _scipy_lsa = None

EOS_COEF = 0.1
L1_W = 5.0
GIOU_W = 2.0
_EPS = 1e-9                                     # guards divides for degenerate boxes
_DUMMY_BOX = np.asarray([0.5, 0.5, 1.0, 1.0], np.float32)  # valid padding box
_OUT_LANES = 128                                # lane-dense packed loss row
_TCHUNK = 8                                     # target rows per in-kernel chunk


def _round_up(x, m):
    return ((x + m - 1) // m) * m


# ----------------------------------------------------------------------------
# Pallas kernel 1 (grid over batch blocks):
#   C^T[b, t, q] = -p_fg + l1_w * L1 + giou_w * (1 - GIoU)
#   pred_ref : (Bt, 8, NQp)   rows 0-1 logits, rows 2-5 boxes (cx,cy,w,h)
#   tbox_ref : (Bt, Tp, 4)    targets, natural layout
#   c_ref    : (Bt, Tp, NQp)  targets on sublanes, queries on lanes
# Target axis processed in chunks of 8 sublane rows to bound vreg pressure.
# ----------------------------------------------------------------------------
def _cost_kernel(pred_ref, tbox_ref, c_ref, *, l1_w, giou_w, n_chunks):
    pred = pred_ref[...]                                 # (Bt, 8, NQp)
    lg0 = pred[:, 0:1, :]
    lg1 = pred[:, 1:2, :]
    mx = jnp.maximum(lg0, lg1)
    e0 = jnp.exp(lg0 - mx)
    e1 = jnp.exp(lg1 - mx)
    prob_fg = e0 * pl.reciprocal(e0 + e1, approx=True)   # softmax[..., 0]
    cost_class = -prob_fg                                # (Bt, 1, NQp)

    pcx = pred[:, 2:3, :]
    pcy = pred[:, 3:4, :]
    pw = pred[:, 4:5, :]
    ph = pred[:, 5:6, :]

    def chunk(i, carry):
        t0 = pl.multiple_of(i * _TCHUNK, _TCHUNK)
        tb = tbox_ref[:, pl.ds(t0, _TCHUNK), :]          # (Bt, 8, 4)
        tcx = tb[:, :, 0:1]
        tcy = tb[:, :, 1:2]
        tw = tb[:, :, 2:3]
        th = tb[:, :, 3:4]

        # pairwise L1 (torch.cdist p=1): (Bt,1,NQp) vs (Bt,8,1) -> (Bt,8,NQp)
        cost_l1 = (jnp.abs(pcx - tcx) + jnp.abs(pcy - tcy)
                   + jnp.abs(pw - tw) + jnp.abs(ph - th))

        # cxcywh -> xyxy (pred corners recomputed per chunk: cheap, keeps the
        # persistent register footprint down)
        px1, px2 = pcx - 0.5 * pw, pcx + 0.5 * pw
        py1, py2 = pcy - 0.5 * ph, pcy + 0.5 * ph
        tx1, tx2 = tcx - 0.5 * tw, tcx + 0.5 * tw
        ty1, ty2 = tcy - 0.5 * th, tcy + 0.5 * th

        area_p = (px2 - px1) * (py2 - py1)
        area_t = (tx2 - tx1) * (ty2 - ty1)

        iw = jnp.maximum(jnp.minimum(px2, tx2) - jnp.maximum(px1, tx1), 0.0)
        ih = jnp.maximum(jnp.minimum(py2, ty2) - jnp.maximum(py1, ty1), 0.0)
        inter = iw * ih
        union = area_p + area_t - inter
        iou = inter * pl.reciprocal(jnp.maximum(union, _EPS), approx=True)

        ew = jnp.maximum(jnp.maximum(px2, tx2) - jnp.minimum(px1, tx1), 0.0)
        eh = jnp.maximum(jnp.maximum(py2, ty2) - jnp.minimum(py1, ty1), 0.0)
        enc = ew * eh
        giou = iou - (enc - union) * pl.reciprocal(jnp.maximum(enc, _EPS),
                                                   approx=True)

        c_ref[:, pl.ds(t0, _TCHUNK), :] = (cost_class + l1_w * cost_l1
                                           + giou_w * (1.0 - giou))
        return carry

    jax.lax.fori_loop(0, n_chunks, chunk, None, unroll=True)


def cost_matrices(pred_packed, tgt_pad, l1_w, giou_w, bt):
    bs_pad, _, nqp = pred_packed.shape
    tp = tgt_pad.shape[1]
    n_chunks = tp // _TCHUNK
    grid_spec = pltpu.PrefetchScalarGridSpec(
        num_scalar_prefetch=0,
        grid=(bs_pad // bt,),
        in_specs=[
            pl.BlockSpec((bt, 8, nqp), lambda b: (b, 0, 0)),
            pl.BlockSpec((bt, tp, 4), lambda b: (b, 0, 0)),
        ],
        out_specs=pl.BlockSpec((bt, tp, nqp), lambda b: (b, 0, 0)),
    )
    cost_est = pl.CostEstimate(
        flops=int(bs_pad * tp * nqp * 40),
        transcendentals=int(bs_pad * nqp * 2 + bs_pad * tp * nqp * 2),
        bytes_accessed=int(4 * (pred_packed.size + tgt_pad.size
                                + bs_pad * tp * nqp)))
    return pl.pallas_call(
        functools.partial(_cost_kernel, l1_w=float(l1_w), giou_w=float(giou_w),
                          n_chunks=n_chunks),
        out_shape=jax.ShapeDtypeStruct((bs_pad, tp, nqp), jnp.float32),
        grid_spec=grid_spec,
        compiler_params=pltpu.CompilerParams(dimension_semantics=("parallel",)),
        cost_estimate=cost_est,
    )(pred_packed, tgt_pad)


# ----------------------------------------------------------------------------
# Pallas kernel 2 (grid over batch blocks): per-batch loss components.
#   clsw_ref  : (Bt, 4, NQp)  rows: logit0, logit1, matched mask m, CE weight w
#                             (w already includes eos_coef and query-valid mask)
#   match_ref : (Bt, 8, Mp)   rows 0-3 matched pred boxes, 4-7 matched targets,
#                             matched pairs on lanes; padded pairs are identical
#                             dummy boxes -> contribute exactly 0.
#   out_ref   : (Bt, 1, 128)  lane 0 = weighted CE, lane 1 = sum L1,
#                             lane 2 = sum (1 - GIoU)
# Exact division here (final loss normalizations); approx reciprocal is only
# used in the matching-cost kernel.
# ----------------------------------------------------------------------------
def _loss_kernel(clsw_ref, match_ref, out_ref):
    cw = clsw_ref[...]                                   # (Bt, 4, NQp)
    lg0 = cw[:, 0:1, :]
    lg1 = cw[:, 1:2, :]
    m = cw[:, 2:3, :]
    w = cw[:, 3:4, :]
    mx = jnp.maximum(lg0, lg1)
    e0 = jnp.exp(lg0 - mx)
    e1 = jnp.exp(lg1 - mx)
    lse = mx + jnp.log(e0 + e1)
    sel = m * lg0 + (1.0 - m) * lg1                      # logit of target class
    nll = lse - sel
    num = jnp.sum(w * nll, axis=2, keepdims=True)        # (Bt, 1, 1)
    den = jnp.sum(w, axis=2, keepdims=True)
    loss_cls = num / den                                 # exact divide

    mb = match_ref[...]                                  # (Bt, 8, Mp)
    pcx, pcy, pw, ph = mb[:, 0:1, :], mb[:, 1:2, :], mb[:, 2:3, :], mb[:, 3:4, :]
    tcx, tcy, tw, th = mb[:, 4:5, :], mb[:, 5:6, :], mb[:, 6:7, :], mb[:, 7:8, :]

    l1_sum = jnp.sum(jnp.abs(pcx - tcx) + jnp.abs(pcy - tcy)
                     + jnp.abs(pw - tw) + jnp.abs(ph - th),
                     axis=2, keepdims=True)              # (Bt, 1, 1)

    px1, px2 = pcx - 0.5 * pw, pcx + 0.5 * pw
    py1, py2 = pcy - 0.5 * ph, pcy + 0.5 * ph
    tx1, tx2 = tcx - 0.5 * tw, tcx + 0.5 * tw
    ty1, ty2 = tcy - 0.5 * th, tcy + 0.5 * th
    area_p = (px2 - px1) * (py2 - py1)
    area_t = (tx2 - tx1) * (ty2 - ty1)
    iw = jnp.maximum(jnp.minimum(px2, tx2) - jnp.maximum(px1, tx1), 0.0)
    ih = jnp.maximum(jnp.minimum(py2, ty2) - jnp.maximum(py1, ty1), 0.0)
    inter = iw * ih
    union = area_p + area_t - inter
    iou = inter / jnp.maximum(union, _EPS)
    ew = jnp.maximum(jnp.maximum(px2, tx2) - jnp.minimum(px1, tx1), 0.0)
    eh = jnp.maximum(jnp.maximum(py2, ty2) - jnp.minimum(py1, ty1), 0.0)
    enc = ew * eh
    giou = iou - (enc - union) / jnp.maximum(enc, _EPS)
    giou_sum = jnp.sum(1.0 - giou, axis=2, keepdims=True)  # (Bt, 1, 1)

    lane = jax.lax.broadcasted_iota(jnp.int32, out_ref.shape, 2)
    out_ref[...] = (jnp.where(lane == 0, loss_cls, 0.0)
                    + jnp.where(lane == 1, l1_sum, 0.0)
                    + jnp.where(lane == 2, giou_sum, 0.0))


def batched_losses(clsw, matched, bt):
    bs_pad, _, nqp = clsw.shape
    mpad = matched.shape[2]
    grid_spec = pltpu.PrefetchScalarGridSpec(
        num_scalar_prefetch=0,
        grid=(bs_pad // bt,),
        in_specs=[
            pl.BlockSpec((bt, 4, nqp), lambda b: (b, 0, 0)),
            pl.BlockSpec((bt, 8, mpad), lambda b: (b, 0, 0)),
        ],
        out_specs=pl.BlockSpec((bt, 1, _OUT_LANES), lambda b: (b, 0, 0)),
    )
    cost_est = pl.CostEstimate(
        flops=int(bs_pad * (nqp * 12 + mpad * 40)),
        transcendentals=int(bs_pad * nqp * 3),
        bytes_accessed=int(4 * (clsw.size + matched.size
                                + bs_pad * _OUT_LANES)))
    return pl.pallas_call(
        _loss_kernel,
        out_shape=jax.ShapeDtypeStruct((bs_pad, 1, _OUT_LANES), jnp.float32),
        grid_spec=grid_spec,
        compiler_params=pltpu.CompilerParams(dimension_semantics=("parallel",)),
        cost_estimate=cost_est,
    )(clsw, matched)


# ----------------------------------------------------------------------------
# Host-side polynomial Hungarian assignment
# TODO(synk): the Hungarian assignment is a data-dependent combinatorial search
# with no clean Pallas equivalent; it is solved on host (scipy or O(n^3) JV)
# over the Pallas-computed cost matrices, fetched with a single device_get.
# ----------------------------------------------------------------------------
def _hungarian_np(cost):
    """O(n^3) assignment for an (n, m) cost matrix with n <= m."""
    n, m = cost.shape
    INF = float("inf")
    u = [0.0] * (n + 1)
    v = [0.0] * (m + 1)
    p = [0] * (m + 1)
    way = [0] * (m + 1)
    for i in range(1, n + 1):
        p[0] = i
        j0 = 0
        minv = [INF] * (m + 1)
        used = [False] * (m + 1)
        while True:
            used[j0] = True
            i0 = p[j0]
            delta = INF
            j1 = 0
            for j in range(1, m + 1):
                if not used[j]:
                    cur = float(cost[i0 - 1, j - 1]) - u[i0] - v[j]
                    if cur < minv[j]:
                        minv[j] = cur
                        way[j] = j0
                    if minv[j] < delta:
                        delta = minv[j]
                        j1 = j
            for j in range(m + 1):
                if used[j]:
                    u[p[j]] += delta
                    v[j] -= delta
                else:
                    minv[j] -= delta
            j0 = j1
            if p[j0] == 0:
                break
        while True:
            j1 = way[j0]
            p[j0] = p[j1]
            j0 = j1
            if j0 == 0:
                break
    row_to_col = [0] * n
    for j in range(1, m + 1):
        if p[j] != 0:
            row_to_col[p[j] - 1] = j - 1
    return np.asarray(row_to_col, dtype=np.int32)


def _lsa_rows_leq_cols(cost):
    """cost: (T, Nq) with T <= Nq. Returns the matched query for each target."""
    if _scipy_lsa is not None:
        r, c = _scipy_lsa(cost)
        out = np.zeros(cost.shape[0], dtype=np.int32)
        out[np.asarray(r)] = np.asarray(c, dtype=np.int32)
        return out
    return _hungarian_np(cost)


# ----------------------------------------------------------------------------
# Full forward
# ----------------------------------------------------------------------------
def hungarian_set_criterion_forward(pred_logits, pred_boxes, targets,
                                    eos_coef=EOS_COEF, l1_w=L1_W, giou_w=GIOU_W):
    bs, nq, _ = pred_logits.shape
    nqp = _round_up(max(nq, 128), 128)                    # lane-dense query axis
    bt = 1 if bs <= 2 else 2                              # keep grid >= 2 (v7x), no spills
    bs_pad = _round_up(bs, bt)

    # one batched host transfer for all target boxes
    tgt_host = [np.asarray(t, np.float32).reshape(-1, 4)
                for t in jax.device_get([tt["boxes"] for tt in targets])]
    t_list = [t.shape[0] for t in tgt_host]
    max_t = max(t_list) if t_list else 0
    tp = _round_up(max(max_t, 1), _TCHUNK)                # sublane-aligned targets
    mpad = _round_up(max(max_t, 1), 128)                  # lane-aligned matched pairs

    # packed lane-dense predictions: rows 0-1 logits, rows 2-5 boxes
    pred_cat = jnp.concatenate([pred_logits.astype(jnp.float32),
                                pred_boxes.astype(jnp.float32)], axis=-1)  # (bs,Nq,6)
    pred_packed = jnp.pad(jnp.transpose(pred_cat, (0, 2, 1)),
                          ((0, bs_pad - bs), (0, 2), (0, nqp - nq)))       # (bs_pad,8,NQp)

    # padded targets; pad rows are valid dummy boxes (keeps divides finite)
    tgt_np = np.tile(_DUMMY_BOX, (bs_pad, tp, 1)).astype(np.float32)
    for b, tb in enumerate(tgt_host):
        if tb.shape[0] > 0:
            tgt_np[b, :tb.shape[0]] = tb
    tgt_pad = jnp.asarray(tgt_np)

    # ---- phase 1: all matching cost matrices in one pallas_call -------------
    c_all = cost_matrices(pred_packed, tgt_pad, l1_w, giou_w, bt)
    # single host sync: valid cost slice + pred boxes (for the host gather)
    c_np, pbox_np = jax.device_get((c_all[:bs, :, :nq],
                                    pred_boxes.astype(jnp.float32)))
    c_np = np.asarray(c_np, np.float32)
    pbox_np = np.asarray(pbox_np, np.float32)

    # ---- host matching + host-side packing for the loss kernel --------------
    matches = []
    counts_np = np.zeros((bs,), np.int32)
    qvalid = np.zeros((nqp,), np.float32)
    qvalid[:nq] = 1.0
    mw_np = np.zeros((bs_pad, 2, nqp), np.float32)        # row0: m, row1: CE weight
    dummy_rows = np.concatenate([_DUMMY_BOX.reshape(4, 1)] * 2, axis=0)    # (8,1)
    matched_np = np.tile(dummy_rows, (bs_pad, 1, mpad)).astype(np.float32)  # (bs_pad,8,Mp)

    for b in range(bs):
        mw_np[b, 1] = qvalid * eos_coef                   # default: background label
        t_b = t_list[b]
        if t_b == 0:
            matches.append((np.zeros((0,), np.int32), np.zeros((0,), np.int32)))
            continue
        ct = c_np[b, :t_b, :]                             # (T, Nq) rows = targets
        idx_q = _lsa_rows_leq_cols(ct)
        idx_t = np.arange(t_b, dtype=np.int32)
        order = np.argsort(idx_q)
        matches.append((idx_q[order], idx_t[order]))
        counts_np[b] = t_b
        mw_np[b, 0, idx_q] = 1.0
        mw_np[b, 1, idx_q] = 1.0                          # ce_weight for class 0
        matched_np[b, 0:4, :t_b] = pbox_np[b, idx_q].T
        matched_np[b, 4:8, :t_b] = tgt_host[b][idx_t].T
    for b in range(bs, bs_pad):                           # padded batch rows
        mw_np[b, 1] = qvalid * eos_coef

    # ---- phase 2: all per-batch losses in one pallas_call --------------------
    clsw = jnp.concatenate([pred_packed[:, 0:2, :], jnp.asarray(mw_np)], axis=1)
    matched = jnp.asarray(matched_np)
    out = batched_losses(clsw, matched, bt)               # (bs_pad, 1, 128)

    out_v = out[:bs, 0, :]
    inv_m = jnp.asarray((1.0 / np.maximum(counts_np, 1)).astype(np.float32))
    loss_cls = jnp.sum(out_v[:, 0])
    loss_l1 = jnp.sum(out_v[:, 1] * inv_m)
    loss_giou = jnp.sum(out_v[:, 2] * inv_m)
    total = loss_cls + l1_w * loss_l1 + giou_w * loss_giou
    return total, matches


# ----------------------------------------------------------------------------
# numpy reference (uses the same matching indices) for validation
# ----------------------------------------------------------------------------
def _np_cxcywh_to_xyxy(b):
    cx, cy, w, h = b[:, 0], b[:, 1], b[:, 2], b[:, 3]
    return np.stack([cx - 0.5 * w, cy - 0.5 * h, cx + 0.5 * w, cy + 0.5 * h], axis=-1)


def _np_giou_pairwise(b1, b2):
    area1 = (b1[:, 2] - b1[:, 0]) * (b1[:, 3] - b1[:, 1])
    area2 = (b2[:, 2] - b2[:, 0]) * (b2[:, 3] - b2[:, 1])
    lt = np.maximum(b1[:, None, :2], b2[None, :, :2])
    rb = np.minimum(b1[:, None, 2:], b2[None, :, 2:])
    wh = np.clip(rb - lt, 0.0, None)
    inter = wh[..., 0] * wh[..., 1]
    union = area1[:, None] + area2[None, :] - inter
    iou = inter / union
    lti = np.minimum(b1[:, None, :2], b2[None, :, :2])
    rbi = np.maximum(b1[:, None, 2:], b2[None, :, 2:])
    whi = np.clip(rbi - lti, 0.0, None)
    areai = whi[..., 0] * whi[..., 1]
    return iou - (areai - union) / areai


def _np_reference(pred_logits, pred_boxes, targets, matches,
                  eos_coef=EOS_COEF, l1_w=L1_W, giou_w=GIOU_W):
    lg = np.asarray(pred_logits, np.float32)
    pb = np.asarray(pred_boxes, np.float32)
    bs, Nq, _ = lg.shape
    total = 0.0
    for b in range(bs):
        tgt = np.asarray(jax.device_get(targets[b]["boxes"]), np.float32).reshape(-1, 4)
        idx_q, idx_t = matches[b]
        labels = np.ones(Nq, np.int64)
        if tgt.shape[0] > 0:
            labels[idx_q] = 0
        logits = lg[b]
        mx = logits.max(-1, keepdims=True)
        lse = np.log(np.exp(logits - mx).sum(-1)) + mx[:, 0]
        nll = lse - logits[np.arange(Nq), labels]
        w = np.where(labels == 0, 1.0, eos_coef)
        total += float(np.sum(w * nll) / np.sum(w))
        if tgt.shape[0] == 0:
            continue
        M = len(idx_q)
        mp = pb[b][idx_q]
        mt = tgt[idx_t]
        total += l1_w * float(np.abs(mp - mt).sum()) / max(M, 1)
        g = np.diagonal(_np_giou_pairwise(_np_cxcywh_to_xyxy(mp), _np_cxcywh_to_xyxy(mt)))
        total += giou_w * float((1.0 - g).sum()) / max(M, 1)
    return total


# ----------------------------------------------------------------------------
if __name__ == "__main__":
    key = jax.random.PRNGKey(0)
    bs, Nq = 2, 8
    k1, k2, k3, k4 = jax.random.split(key, 4)

    pred_logits = jax.random.normal(k1, (bs, Nq, 2), jnp.float32)
    centers = jax.random.uniform(k2, (bs, Nq, 2), minval=0.3, maxval=0.7)
    sizes = jax.random.uniform(k3, (bs, Nq, 2), minval=0.1, maxval=0.4)
    pred_boxes = jnp.concatenate([centers, sizes], axis=-1).astype(jnp.float32)

    targets = []
    kk = k4
    for n_t in (3, 5):
        kk, kc, ks = jax.random.split(kk, 3)
        tc = jax.random.uniform(kc, (n_t, 2), minval=0.3, maxval=0.7)
        ts = jax.random.uniform(ks, (n_t, 2), minval=0.1, maxval=0.4)
        targets.append({"boxes": jnp.concatenate([tc, ts], axis=-1).astype(jnp.float32)})

    total_loss, matches = hungarian_set_criterion_forward(pred_logits, pred_boxes, targets)
    total_loss = jax.block_until_ready(total_loss)

    ref = _np_reference(pred_logits, pred_boxes, targets, matches)
    kern = float(total_loss)
    assert np.isfinite(kern), kern
    assert abs(kern - ref) <= 1e-3 * max(1.0, abs(ref)), (kern, ref)

    print("KERNEL_OK")
</pallas_src>

<mosaic_0001>
module attributes {stable_mosaic.version = 11 : i64} {
  func.func @_cost_kernel(%arg0: i32, %arg1: memref<1x8x128xf32, #tpu.memory_space<vmem>>, %arg2: memref<1x8x4xf32, #tpu.memory_space<vmem>>, %arg3: memref<1x8x128xf32, #tpu.memory_space<vmem>>) attributes {dimension_semantics = [#tpu.dimension_semantics<parallel>], iteration_bounds = array<i64: 2>, scalar_prefetch = 0 : i64, scratch_operands = 0 : i64, tpu.core_type = #tpu.core_type<tc>, window_params = [{transform_indices = @transform_0, window_bounds = array<i64: 1, 8, 128>}, {transform_indices = @transform_1, window_bounds = array<i64: 1, 8, 4>}, {transform_indices = @transform_2, window_bounds = array<i64: 1, 8, 128>}]} {
    %c0 = arith.constant 0 : index
    %c0_0 = arith.constant 0 : index
    %c0_1 = arith.constant 0 : index
    %0 = vector.load %arg1[%c0, %c0_0, %c0_1] : memref<1x8x128xf32, #tpu.memory_space<vmem>>, vector<1x8x128xf32>
    %1 = vector.extract_strided_slice %0 {offsets = [0, 0, 0], sizes = [1, 1, 128], strides = [1, 1, 1]} : vector<1x8x128xf32> to vector<1x1x128xf32>
    %2 = vector.extract_strided_slice %0 {offsets = [0, 1, 0], sizes = [1, 1, 128], strides = [1, 1, 1]} : vector<1x8x128xf32> to vector<1x1x128xf32>
    %3 = arith.maximumf %1, %2 : vector<1x1x128xf32>
    %4 = arith.subf %1, %3 : vector<1x1x128xf32>
    %5 = math.exp %4 : vector<1x1x128xf32>
    %6 = arith.subf %2, %3 : vector<1x1x128xf32>
    %7 = math.exp %6 : vector<1x1x128xf32>
    %8 = arith.addf %5, %7 : vector<1x1x128xf32>
    %9 = tpu.reciprocal %8 {approx = true} : vector<1x1x128xf32> -> vector<1x1x128xf32>
    %10 = arith.mulf %5, %9 : vector<1x1x128xf32>
    %cst = arith.constant 0.000000e+00 : f32
    %11 = vector.broadcast %cst : f32 to vector<1x1x128xf32>
    %12 = arith.subf %11, %10 : vector<1x1x128xf32>
    %13 = vector.extract_strided_slice %0 {offsets = [0, 2, 0], sizes = [1, 1, 128], strides = [1, 1, 1]} : vector<1x8x128xf32> to vector<1x1x128xf32>
    %14 = vector.extract_strided_slice %0 {offsets = [0, 3, 0], sizes = [1, 1, 128], strides = [1, 1, 1]} : vector<1x8x128xf32> to vector<1x1x128xf32>
    %15 = vector.extract_strided_slice %0 {offsets = [0, 4, 0], sizes = [1, 1, 128], strides = [1, 1, 1]} : vector<1x8x128xf32> to vector<1x1x128xf32>
    %16 = vector.extract_strided_slice %0 {offsets = [0, 5, 0], sizes = [1, 1, 128], strides = [1, 1, 1]} : vector<1x8x128xf32> to vector<1x1x128xf32>
    %c0_i32 = arith.constant 0 : i32
    %c8_i32 = arith.constant 8 : i32
    %17 = arith.muli %c0_i32, %c8_i32 : i32
    %18 = tpu.assume_multiple %17, 8 : i32
    %c0_2 = arith.constant 0 : index
    %19 = arith.index_cast %18 : i32 to index
    %c0_3 = arith.constant 0 : index
    %20 = vector.load %arg2[%c0_2, %19, %c0_3] : memref<1x8x4xf32, #tpu.memory_space<vmem>>, vector<1x8x4xf32>
    %21 = vector.extract_strided_slice %20 {offsets = [0, 0, 0], sizes = [1, 8, 1], strides = [1, 1, 1]} : vector<1x8x4xf32> to vector<1x8x1xf32>
    %22 = vector.extract_strided_slice %20 {offsets = [0, 0, 1], sizes = [1, 8, 1], strides = [1, 1, 1]} : vector<1x8x4xf32> to vector<1x8x1xf32>
    %23 = vector.extract_strided_slice %20 {offsets = [0, 0, 2], sizes = [1, 8, 1], strides = [1, 1, 1]} : vector<1x8x4xf32> to vector<1x8x1xf32>
    %24 = vector.extract_strided_slice %20 {offsets = [0, 0, 3], sizes = [1, 8, 1], strides = [1, 1, 1]} : vector<1x8x4xf32> to vector<1x8x1xf32>
    %25 = vector.broadcast %13 : vector<1x1x128xf32> to vector<1x8x128xf32>
    %26 = vector.broadcast %21 : vector<1x8x1xf32> to vector<1x8x128xf32>
    %27 = arith.subf %25, %26 : vector<1x8x128xf32>
    %28 = math.absf %27 : vector<1x8x128xf32>
    %29 = vector.broadcast %14 : vector<1x1x128xf32> to vector<1x8x128xf32>
    %30 = vector.broadcast %22 : vector<1x8x1xf32> to vector<1x8x128xf32>
    %31 = arith.subf %29, %30 : vector<1x8x128xf32>
    %32 = math.absf %31 : vector<1x8x128xf32>
    %33 = arith.addf %28, %32 : vector<1x8x128xf32>
    %34 = vector.broadcast %15 : vector<1x1x128xf32> to vector<1x8x128xf32>
    %35 = vector.broadcast %23 : vector<1x8x1xf32> to vector<1x8x128xf32>
    %36 = arith.subf %34, %35 : vector<1x8x128xf32>
    %37 = math.absf %36 : vector<1x8x128xf32>
    %38 = arith.addf %33, %37 : vector<1x8x128xf32>
    %39 = vector.broadcast %16 : vector<1x1x128xf32> to vector<1x8x128xf32>
    %40 = vector.broadcast %24 : vector<1x8x1xf32> to vector<1x8x128xf32>
    %41 = arith.subf %39, %40 : vector<1x8x128xf32>
    %42 = math.absf %41 : vector<1x8x128xf32>
    %43 = arith.addf %38, %42 : vector<1x8x128xf32>
    %cst_4 = arith.constant 5.000000e-01 : f32
    %44 = vector.broadcast %cst_4 : f32 to vector<1x1x128xf32>
    %45 = arith.mulf %44, %15 : vector<1x1x128xf32>
    %46 = arith.subf %13, %45 : vector<1x1x128xf32>
    %cst_5 = arith.constant 5.000000e-01 : f32
    %47 = vector.broadcast %cst_5 : f32 to vector<1x1x128xf32>
    %48 = arith.mulf %47, %15 : vector<1x1x128xf32>
    %49 = arith.addf %13, %48 : vector<1x1x128xf32>
    %cst_6 = arith.constant 5.000000e-01 : f32
    %50 = vector.broadcast %cst_6 : f32 to vector<1x1x128xf32>
    %51 = arith.mulf %50, %16 : vector<1x1x128xf32>
    %52 = arith.subf %14, %51 : vector<1x1x128xf32>
    %cst_7 = arith.constant 5.000000e-01 : f32
    %53 = vector.broadcast %cst_7 : f32 to vector<1x1x128xf32>
    %54 = arith.mulf %53, %16 : vector<1x1x128xf32>
    %55 = arith.addf %14, %54 : vector<1x1x128xf32>
    %cst_8 = arith.constant 5.000000e-01 : f32
    %56 = vector.broadcast %cst_8 : f32 to vector<1x8x1xf32>
    %57 = arith.mulf %56, %23 : vector<1x8x1xf32>
    %58 = arith.subf %21, %57 : vector<1x8x1xf32>
    %cst_9 = arith.constant 5.000000e-01 : f32
    %59 = vector.broadcast %cst_9 : f32 to vector<1x8x1xf32>
    %60 = arith.mulf %59, %23 : vector<1x8x1xf32>
    %61 = arith.addf %21, %60 : vector<1x8x1xf32>
    %cst_10 = arith.constant 5.000000e-01 : f32
    %62 = vector.broadcast %cst_10 : f32 to vector<1x8x1xf32>
    %63 = arith.mulf %62, %24 : vector<1x8x1xf32>
    %64 = arith.subf %22, %63 : vector<1x8x1xf32>
    %cst_11 = arith.constant 5.000000e-01 : f32
    %65 = vector.broadcast %cst_11 : f32 to vector<1x8x1xf32>
    %66 = arith.mulf %65, %24 : vector<1x8x1xf32>
    %67 = arith.addf %22, %66 : vector<1x8x1xf32>
    %68 = arith.subf %49, %46 : vector<1x1x128xf32>
    %69 = arith.subf %55, %52 : vector<1x1x128xf32>
    %70 = arith.mulf %68, %69 : vector<1x1x128xf32>
    %71 = arith.subf %61, %58 : vector<1x8x1xf32>
    %72 = arith.subf %67, %64 : vector<1x8x1xf32>
    %73 = arith.mulf %71, %72 : vector<1x8x1xf32>
    %74 = vector.broadcast %49 : vector<1x1x128xf32> to vector<1x8x128xf32>
    %75 = vector.broadcast %61 : vector<1x8x1xf32> to vector<1x8x128xf32>
    %76 = arith.minimumf %74, %75 : vector<1x8x128xf32>
    %77 = vector.broadcast %46 : vector<1x1x128xf32> to vector<1x8x128xf32>
    %78 = vector.broadcast %58 : vector<1x8x1xf32> to vector<1x8x128xf32>
    %79 = arith.maximumf %77, %78 : vector<1x8x128xf32>
    %80 = arith.subf %76, %79 : vector<1x8x128xf32>
    %cst_12 = arith.constant 0.000000e+00 : f32
    %81 = vector.broadcast %cst_12 : f32 to vector<1x8x128xf32>
    %82 = arith.maximumf %80, %81 : vector<1x8x128xf32>
    %83 = vector.broadcast %55 : vector<1x1x128xf32> to vector<1x8x128xf32>
    %84 = vector.broadcast %67 : vector<1x8x1xf32> to vector<1x8x128xf32>
    %85 = arith.minimumf %83, %84 : vector<1x8x128xf32>
    %86 = vector.broadcast %52 : vector<1x1x128xf32> to vector<1x8x128xf32>
    %87 = vector.broadcast %64 : vector<1x8x1xf32> to vector<1x8x128xf32>
    %88 = arith.maximumf %86, %87 : vector<1x8x128xf32>
    %89 = arith.subf %85, %88 : vector<1x8x128xf32>
    %cst_13 = arith.constant 0.000000e+00 : f32
    %90 = vector.broadcast %cst_13 : f32 to vector<1x8x128xf32>
    %91 = arith.maximumf %89, %90 : vector<1x8x128xf32>
    %92 = arith.mulf %82, %91 : vector<1x8x128xf32>
    %93 = vector.broadcast %70 : vector<1x1x128xf32> to vector<1x8x128xf32>
    %94 = vector.broadcast %73 : vector<1x8x1xf32> to vector<1x8x128xf32>
    %95 = arith.addf %93, %94 : vector<1x8x128xf32>
    %96 = arith.subf %95, %92 : vector<1x8x128xf32>
    %cst_14 = arith.constant 9.99999971E-10 : f32
    %97 = vector.broadcast %cst_14 : f32 to vector<1x8x128xf32>
    %98 = arith.maximumf %96, %97 : vector<1x8x128xf32>
    %99 = tpu.reciprocal %98 {approx = true} : vector<1x8x128xf32> -> vector<1x8x128xf32>
    %100 = arith.mulf %92, %99 : vector<1x8x128xf32>
    %101 = vector.broadcast %49 : vector<1x1x128xf32> to vector<1x8x128xf32>
    %102 = vector.broadcast %61 : vector<1x8x1xf32> to vector<1x8x128xf32>
    %103 = arith.maximumf %101, %102 : vector<1x8x128xf32>
    %104 = vector.broadcast %46 : vector<1x1x128xf32> to vector<1x8x128xf32>
    %105 = vector.broadcast %58 : vector<1x8x1xf32> to vector<1x8x128xf32>
    %106 = arith.minimumf %104, %105 : vector<1x8x128xf32>
    %107 = arith.subf %103, %106 : vector<1x8x128xf32>
    %cst_15 = arith.constant 0.000000e+00 : f32
    %108 = vector.broadcast %cst_15 : f32 to vector<1x8x128xf32>
    %109 = arith.maximumf %107, %108 : vector<1x8x128xf32>
    %110 = vector.broadcast %55 : vector<1x1x128xf32> to vector<1x8x128xf32>
    %111 = vector.broadcast %67 : vector<1x8x1xf32> to vector<1x8x128xf32>
    %112 = arith.maximumf %110, %111 : vector<1x8x128xf32>
    %113 = vector.broadcast %52 : vector<1x1x128xf32> to vector<1x8x128xf32>
    %114 = vector.broadcast %64 : vector<1x8x1xf32> to vector<1x8x128xf32>
    %115 = arith.minimumf %113, %114 : vector<1x8x128xf32>
    %116 = arith.subf %112, %115 : vector<1x8x128xf32>
    %cst_16 = arith.constant 0.000000e+00 : f32
    %117 = vector.broadcast %cst_16 : f32 to vector<1x8x128xf32>
    %118 = arith.maximumf %116, %117 : vector<1x8x128xf32>
    %119 = arith.mulf %109, %118 : vector<1x8x128xf32>
    %120 = arith.subf %119, %96 : vector<1x8x128xf32>
    %cst_17 = arith.constant 9.99999971E-10 : f32
    %121 = vector.broadcast %cst_17 : f32 to vector<1x8x128xf32>
    %122 = arith.maximumf %119, %121 : vector<1x8x128xf32>
    %123 = tpu.reciprocal %122 {approx = true} : vector<1x8x128xf32> -> vector<1x8x128xf32>
    %124 = arith.mulf %120, %123 : vector<1x8x128xf32>
    %125 = arith.subf %100, %124 : vector<1x8x128xf32>
    %cst_18 = arith.constant 5.000000e+00 : f32
    %126 = vector.broadcast %cst_18 : f32 to vector<1x8x128xf32>
    %127 = arith.mulf %126, %43 : vector<1x8x128xf32>
    %128 = vector.broadcast %12 : vector<1x1x128xf32> to vector<1x8x128xf32>
    %129 = arith.addf %128, %127 : vector<1x8x128xf32>
    %cst_19 = arith.constant 1.000000e+00 : f32
    %130 = vector.broadcast %cst_19 : f32 to vector<1x8x128xf32>
    %131 = arith.subf %130, %125 : vector<1x8x128xf32>
    %cst_20 = arith.constant 2.000000e+00 : f32
    %132 = vector.broadcast %cst_20 : f32 to vector<1x8x128xf32>
    %133 = arith.mulf %132, %131 : vector<1x8x128xf32>
    %134 = arith.addf %129, %133 : vector<1x8x128xf32>
    %c0_21 = arith.constant 0 : index
    %135 = arith.index_cast %18 : i32 to index
    %c0_22 = arith.constant 0 : index
    %136 = vector.load %arg3[%c0_21, %135, %c0_22] : memref<1x8x128xf32, #tpu.memory_space<vmem>>, vector<1x8x128xf32>
    tpu.vector_store %arg3[%c0_21, %135, %c0_22], %134 {strides = array<i32>} : memref<1x8x128xf32, #tpu.memory_space<vmem>>, vector<1x8x128xf32>,
    %c1_i32 = arith.constant 1 : i32
    return
  }
  func.func @transform_0(%arg0: i32) -> (i32, i32, i32) {
    %c0_i32 = arith.constant 0 : i32
    %c0_i32_0 = arith.constant 0 : i32
    %c0_i32_1 = arith.constant 0 : i32
    return %arg0, %c0_i32, %c0_i32_0 : i32, i32, i32
  }
  func.func @transform_1(%arg0: i32) -> (i32, i32, i32) {
    %c0_i32 = arith.constant 0 : i32
    %c0_i32_0 = arith.constant 0 : i32
    %c0_i32_1 = arith.constant 0 : i32
    return %arg0, %c0_i32, %c0_i32_0 : i32, i32, i32
  }
  func.func @transform_2(%arg0: i32) -> (i32, i32, i32) {
    %c0_i32 = arith.constant 0 : i32
    %c0_i32_0 = arith.constant 0 : i32
    %c0_i32_1 = arith.constant 0 : i32
    return %arg0, %c0_i32, %c0_i32_0 : i32, i32, i32
  }
}

</mosaic_0001>

<llo_original>
// kernel: tpu_custom_call.1
$region0: #{tpu_custom_call.1}
  #allocation0 [shape = 'u32[]', space=smem, size = 0x4, offset = 0x4, fixed_abs, tag = 'smem constant byte address 0x4 - core index']
  #allocation1 [shape = 'u32[144,128]{1,0:T(1,128)}', space=vmem, size = 0x12000, scoped, tag = 'internal scratch']
  %s0 = inlined_call_operand.vmem [shape: f32[2,8,128], index: 0, kind: input, shape index: {}]
  %s1 = inlined_call_operand.vmem [shape: f32[2,8,4], index: 1, kind: input, shape index: {}]
  %s2 = inlined_call_operand.hbm [shape: f32[2,8,128], index: 2, kind: output, shape index: {}]
  %s3 = sld [smem:[#allocation0]]
  $region41: #{tpu_custom_call.1} parent=0
    _
  %s5 = ssub.s32 1, %s3
  %s6 = scalar_select 0, %s5, %s3
  $region1: #{tpu_custom_call.1} parent=0
    #allocation2 [shape = 'u8[8192]{0}', space=vmem, size = 0x2000, scoped, tag = 'output window, operand 0']
    #allocation3 [shape = 's32[2]{0}', space=sflag, size = 0x8, scoped, tag = 'scoped memory for tpu_custom_call.1']
    %7 = vsyncpa [#allocation3], 0
    %s8 = scalar_lea.sflag [#allocation3], 1
    %9 = vsyncpa %s8, 0
    loop: start=0, step=1, limit=4
    $region2: #{tpu_custom_call.1} parent=1 // loop_pre_header
      _
    $region3: #{tpu_custom_call.1} parent=1 // loop_header
      %s11 = sphi 0, %s15
      %p12 = scmp.ge.s32.totalorder %s11, 4
      %s21 = sphi 0, %s23
      %s24 = sphi 0, %s21
      %s25 = sphi 0, %s24
      %s41 = sphi 0, %s25
      %s47 = sphi 0, %s49
      %s50 = sphi 0, %s47
      %s51 = sphi 0, %s50
      %s67 = sphi 0, %s51
      %s73 = sphi 0, %s75
      %s76 = sphi 0, %s73
      %s77 = sphi 0, %s76
      %s93 = sphi 0, %s77
    $region4: #{tpu_custom_call.1} parent=1 // loop_header_branch
      %14 = sbr.rel (%p12) target = $region8
    $region5: #{tpu_custom_call.1} parent=1 // loop_body
      %s16 = ssub.s32 %s11, 1
      %s17 = ssub.s32 %s11, 2
      %s18 = sadd.s32 %s11, 1
      %s19 = ssub.s32 %s11, %s18
      %p20 = scmp.eq.s32.totalorder %s19, 0
      %s22 = sadd.s32 %s21, 1
      %s23 = scalar_select %p20, %s21, %s22
      %p26 = pneg %p20
      %p27 = scmp.eq.s32.totalorder %s11, 1
      %p28 = por %p26, %p27
      %p29 = scmp.ne.s32.totalorder %s21, %s24
      %p30 = scmp.eq.s32.totalorder %s11, 0
      %p31 = por %p29, %p30
      %p32 = scmp.ne.s32.totalorder %s21, %s24
      %p33 = scmp.eq.s32.totalorder %s16, 1
      %p34 = por %p32, %p33
      %p35 = scmp.ne.s32.totalorder %s24, %s25
      %p36 = scmp.eq.s32.totalorder %s16, 0
      %p37 = por %p35, %p36
      %p38 = scmp.ne.s32.totalorder %s24, %s25
      %p39 = scmp.eq.s32.totalorder %s17, 1
      %p40 = por %p38, %p39
      %p42 = scmp.ne.s32.totalorder %s25, %s41
      %p43 = scmp.eq.s32.totalorder %s17, 0
      %p44 = por %p42, %p43
      %s45 = ssub.s32 %s11, %s18
      %p46 = scmp.eq.s32.totalorder %s45, 0
      %s48 = sadd.s32 %s47, 1
      %s49 = scalar_select %p46, %s47, %s48
      %p52 = pneg %p46
      %p53 = scmp.eq.s32.totalorder %s11, 1
      %p54 = por %p52, %p53
      %p55 = scmp.ne.s32.totalorder %s47, %s50
      %p56 = scmp.eq.s32.totalorder %s11, 0
      %p57 = por %p55, %p56
      %p58 = scmp.ne.s32.totalorder %s47, %s50
      %p59 = scmp.eq.s32.totalorder %s16, 1
      %p60 = por %p58, %p59
      %p61 = scmp.ne.s32.totalorder %s50, %s51
      %p62 = scmp.eq.s32.totalorder %s16, 0
      %p63 = por %p61, %p62
      %p64 = scmp.ne.s32.totalorder %s50, %s51
      %p65 = scmp.eq.s32.totalorder %s17, 1
      %p66 = por %p64, %p65
      %p68 = scmp.ne.s32.totalorder %s51, %s67
      %p69 = scmp.eq.s32.totalorder %s17, 0
      %p70 = por %p68, %p69
      %s71 = ssub.s32 %s11, %s18
      %p72 = scmp.eq.s32.totalorder %s71, 0
      %s74 = sadd.s32 %s73, 1
      %s75 = scalar_select %p72, %s73, %s74
      %p78 = pneg %p72
      %p79 = scmp.eq.s32.totalorder %s11, 1
      %p80 = por %p78, %p79
      %p81 = scmp.ne.s32.totalorder %s73, %s76
      %p82 = scmp.eq.s32.totalorder %s11, 0
      %p83 = por %p81, %p82
      %p84 = scmp.ne.s32.totalorder %s73, %s76
      %p85 = scmp.eq.s32.totalorder %s16, 1
      %p86 = por %p84, %p85
      %p87 = scmp.ne.s32.totalorder %s76, %s77
      %p88 = scmp.eq.s32.totalorder %s16, 0
      %p89 = por %p87, %p88
      %p90 = scmp.ne.s32.totalorder %s76, %s77
      %p91 = scmp.eq.s32.totalorder %s17, 1
      %p92 = por %p90, %p91
      %p94 = scmp.ne.s32.totalorder %s77, %s93
      %p95 = scmp.eq.s32.totalorder %s17, 0
      %p96 = por %p94, %p95
      %p97 = scmp.le.s32.totalorder 1, %s11
      %p98 = scmp.lt.s32.totalorder %s11, 3
      %p99 = pnand %p97, %p98
      %p100 = pneg %p99
      // Predicated region
      $region9: #{tpu_custom_call.1} parent=5 // pred_check
        _
      $region10: #{tpu_custom_call.1} parent=5 // pred_check_branch
        %102 = sbr.rel (%p99) target = $region12
      $region11: #{tpu_custom_call.1} parent=5 // pred_region
        %s103 = ssub.s32 %s11, 1
      $region12: #{tpu_custom_call.1} parent=5 // pred_fallthru
        _
      %p104 = scmp.lt.s32.totalorder %s11, 2
      // Predicated region
      $region13: #{tpu_custom_call.1} parent=5 // pred_check
        %p105 = pneg %p104
      $region14: #{tpu_custom_call.1} parent=5 // pred_check_branch
        %107 = sbr.rel (%p105) target = $region16
      $region15: #{tpu_custom_call.1} parent=5 // pred_region
        // Predicated region
        $region17: #{tpu_custom_call.1} parent=15 // pred_check
          %p108 = pneg %p31
        $region18: #{tpu_custom_call.1} parent=15 // pred_check_branch
          %110 = sbr.rel (%p108) target = $region20
        $region19: #{tpu_custom_call.1} parent=15 // pred_region
          %p111 = scmp.lt.s32.totalorder %s11, 1
          %s112 = scalar_select %p111, %s11, 1
          %s113 = smul.addr %s112, 8
          %s114 = scalar_lea.vmem %s0, %s113
        $region20: #{tpu_custom_call.1} parent=15 // pred_fallthru
          _
        // Predicated region
        $region21: #{tpu_custom_call.1} parent=15 // pred_check
          %p115 = pneg %p57
        $region22: #{tpu_custom_call.1} parent=15 // pred_check_branch
          %117 = sbr.rel (%p115) target = $region24
        $region23: #{tpu_custom_call.1} parent=15 // pred_region
          %p118 = scmp.lt.s32.totalorder %s11, 1
          %s119 = scalar_select %p118, %s11, 1
          %s120 = smul.addr %s119, 8
          %s121 = scalar_lea.vmem %s1, %s120
        $region24: #{tpu_custom_call.1} parent=15 // pred_fallthru
          _
      $region16: #{tpu_custom_call.1} parent=5 // pred_fallthru
        _
      %p122 = scmp.le.s32.totalorder 1, %s11
      %p123 = scmp.lt.s32.totalorder %s11, 3
      %p124 = pnand %p122, %p123
      %p125 = pneg %p124
      // Predicated region
      $region25: #{tpu_custom_call.1} parent=5 // pred_check
        _
      $region26: #{tpu_custom_call.1} parent=5 // pred_check_branch
        %127 = sbr.rel (%p124) target = $region28
      $region27: #{tpu_custom_call.1} parent=5 // pred_region
        %s128 = ssub.s32 %s11, 1
        %p129 = scmp.lt.s32.totalorder %s16, 1
        %s130 = scalar_select %p129, %s16, 1
        %s131 = smul.addr %s130, 8
        %s132 = scalar_lea.vmem %s0, %s131
        %p133 = pneg %p37
        %p134 = pneg %p34
        %p135 = scmp.lt.s32.totalorder %s16, 1
        %s136 = scalar_select %p135, %s16, 1
        %s137 = smul.addr %s136, 8
        %s138 = scalar_lea.vmem %s1, %s137
        %p139 = pneg %p63
        %p140 = pneg %p60
        %p141 = pneg %p89
        %p142 = pneg %p86
        %s143 = sand.u32 %s76, 1
        %s144 = scalar_lea.sflag [#allocation3], %s143
        %s145 = sand.u32 %s76, 1
        %s146 = smul.addr %s145, 8
        %s147 = scalar_lea.vmem [#allocation2], %s146
        %p148 = scmp.lt.s32.totalorder %s16, 1
        %s149 = scalar_select %p148, %s16, 1
        %s150 = smul.addr %s149, 8
        %s151 = scalar_lea.vmem %s0, %s150
        %p152 = scmp.lt.s32.totalorder %s16, 1
        %s153 = scalar_select %p152, %s16, 1
        %s154 = smul.addr %s153, 8
        %s155 = scalar_lea.vmem %s1, %s154
        %v156 = vld [vmem:[%s151] sm:$0xff]
        %v158 = vrot.slane %v156, 1
        %v160 = vmax.f32 %v156, %v158
        %v161 = vsub.f32 %v156, %v160
        %v162 = vmul.f32 %v161, 1.442695
        %v163 = vpow.pop %v162
        %v165 = vrot.slane %v160, 7
        %v167 = vsub.f32 %v156, %v165
        %v168 = vmul.f32 %v167, 1.442695
        %v169 = vpow.pop %v168
        %v171 = vrot.slane %v169, 1
        %v173 = vadd.f32 %v163, %v171
        %v174 = vrcp.pop %v173
        %v175 = vmul.f32 %v163, %v174
        %v176 = vsub.f32 0.0, %v175
        %v177 = vld [vmem:[%s155] sm:$0xff]
        %v178 = vlaneseq
        %v179 = vshrl.u32 %v178, 7
        %v180 = vsub.s32 2, %v179
        %v181 = vrot.slane %v156, %v180
        %183 = vset.pattern.permute.xlu0 0
        %184 = vperm.xlu0 %183, %v177
        %v185 = vpop.permute.xlu0 %184
        %v187 = vsub.f32 %v181, %v185
        %v188 = vand.u32 2147483647, %v187
        %v189 = vlaneseq
        %v190 = vshrl.u32 %v189, 7
        %v191 = vsub.s32 3, %v190
        %v192 = vrot.slane %v156, %v191
        %193 = vset.pattern.permute.xlu0 1
        %194 = vperm.xlu0 %193, %v177
        %v195 = vpop.permute.xlu0 %194
        %v197 = vsub.f32 %v192, %v195
        %v198 = vand.u32 2147483647, %v197
        %v199 = vadd.f32 %v188, %v198
        %v200 = vlaneseq
        %v201 = vshrl.u32 %v200, 7
        %v202 = vsub.s32 4, %v201
        %v203 = vrot.slane %v156, %v202
        %204 = vset.pattern.permute.xlu0 2
        %205 = vperm.xlu0 %204, %v177
        %v206 = vpop.permute.xlu0 %205
        %v208 = vsub.f32 %v203, %v206
        %v209 = vand.u32 2147483647, %v208
        %v210 = vadd.f32 %v199, %v209
        %v211 = vlaneseq
        %v212 = vshrl.u32 %v211, 7
        %v213 = vsub.s32 5, %v212
        %v214 = vrot.slane %v156, %v213
        %215 = vset.pattern.permute.xlu0 3
        %216 = vperm.xlu0 %215, %v177
        %v217 = vpop.permute.xlu0 %216
        %v219 = vsub.f32 %v214, %v217
        %v220 = vand.u32 2147483647, %v219
        %v221 = vadd.f32 %v210, %v220
        %v222 = vmul.f32 %v156, 0.5
        %v224 = vrot.slane %v222, 2
        %v226 = vsub.f32 %v156, %v224
        %v227 = vadd.f32 %v156, %v224
        %v228 = vmul.f32 %v177, 0.5
        %230 = vrot.lane.b32.xlu0 %v228, 126
        %v231 = vpop.permute.xlu0 %230
        %v233 = vsub.f32 %v177, %v231
        %v234 = vadd.f32 %v177, %v231
        %v235 = vsub.f32 %v227, %v226
        %v237 = vrot.slane %v235, 1
        %v239 = vmul.f32 %v235, %v237
        %v240 = vsub.f32 %v234, %v233
        %242 = vrot.lane.b32.xlu0 %v240, 127
        %v243 = vpop.permute.xlu0 %242
        %v245 = vmul.f32 %v240, %v243
        %v246 = vlaneseq
        %v247 = vshrl.u32 %v246, 7
        %v248 = vsub.s32 2, %v247
        %v249 = vrot.slane %v227, %v248
        %251 = vset.pattern.permute.xlu0 0
        %252 = vperm.xlu0 %251, %v234
        %v253 = vpop.permute.xlu0 %252
        %v255 = vmin.f32 %v249, %v253
        %v256 = vlaneseq
        %v257 = vshrl.u32 %v256, 7
        %v258 = vsub.s32 2, %v257
        %v259 = vrot.slane %v226, %v258
        %261 = vset.pattern.permute.xlu0 0
        %262 = vperm.xlu0 %261, %v233
        %v263 = vpop.permute.xlu0 %262
        %v265 = vmax.f32 %v259, %v263
        %v266 = vsub.f32 %v255, %v265
        %v267 = vmax.f32 %v266, 0.0
        %v268 = vlaneseq
        %v269 = vshrl.u32 %v268, 7
        %v270 = vsub.s32 3, %v269
        %v271 = vrot.slane %v227, %v270
        %272 = vset.pattern.permute.xlu0 1
        %273 = vperm.xlu0 %272, %v234
        %v274 = vpop.permute.xlu0 %273
        %v276 = vmin.f32 %v271, %v274
        %v277 = vlaneseq
        %v278 = vshrl.u32 %v277, 7
        %v279 = vsub.s32 3, %v278
        %v280 = vrot.slane %v226, %v279
        %281 = vset.pattern.permute.xlu0 1
        %282 = vperm.xlu0 %281, %v233
        %v283 = vpop.permute.xlu0 %282
        %v285 = vmax.f32 %v280, %v283
        %v286 = vsub.f32 %v276, %v285
        %v287 = vmax.f32 %v286, 0.0
        %v288 = vmul.f32 %v267, %v287
        %v289 = vlaneseq
        %v290 = vshrl.u32 %v289, 7
        %v291 = vsub.s32 2, %v290
        %v292 = vrot.slane %v239, %v291
        %294 = vset.pattern.permute.xlu0 0
        %295 = vperm.xlu0 %294, %v245
        %v296 = vpop.permute.xlu0 %295
        %v298 = vadd.f32 %v292, %v296
        %v299 = vsub.f32 %v298, %v288
        %v300 = vmax.f32 %v299, 1e-09
        %v301 = vrcp.pop %v300
        %v302 = vmul.f32 %v288, %v301
        %v303 = vmax.f32 %v249, %v253
        %v304 = vmin.f32 %v259, %v263
        %v305 = vsub.f32 %v303, %v304
        %v306 = vmax.f32 %v305, 0.0
        %v307 = vmax.f32 %v271, %v274
        %v308 = vmin.f32 %v280, %v283
        %v309 = vsub.f32 %v307, %v308
        %v310 = vmax.f32 %v309, 0.0
        %v311 = vmul.f32 %v306, %v310
        %v312 = vsub.f32 %v311, %v299
        %v313 = vmax.f32 %v311, 1e-09
        %v314 = vrcp.pop %v313
        %v315 = vmul.f32 %v312, %v314
        %v316 = vsub.f32 %v302, %v315
        %v317 = vmul.f32 %v221, 5.0
        %v318 = vlaneseq
        %v319 = vshrl.u32 %v318, 7
        %v320 = vsub.s32 0, %v319
        %v321 = vrot.slane %v176, %v320
        %v322 = vadd.f32 %v321, %v317
        %v323 = vsub.f32 1.0, %v316
        %v324 = vmul.f32 %v323, 2.0
        %v325 = vadd.f32 %v322, %v324
        %326 = vst [vmem:[%s147] sm:$0xff] %v325
        %s327 = sand.u32 %s76, 1
        %s328 = scalar_lea.sflag [#allocation3], %s327
        %s329 = sand.u32 %s76, 1
        %s330 = smul.addr %s329, 8
        %s331 = scalar_lea.vmem [#allocation2], %s330
        // Predicated region
        $region29: #{tpu_custom_call.1} parent=27 // pred_check
          %p332 = pneg %p86
        $region30: #{tpu_custom_call.1} parent=27 // pred_check_branch
          %334 = sbr.rel (%p332) target = $region32
        $region31: #{tpu_custom_call.1} parent=27 // pred_region
          %s336 = ssub.s32 128, 128
          %337 = vsyncadd %s328, %s336
          %s338 = smul.addr %s16, 128
          %s339 = scalar_lea.hbm %s2, %s338
          %s341 = sshll.u32 %s331, 4
          %s342 = int_to_ptr.vmem [resolvable:$true] %s341
          %344 = dma.vmem_to_hbm [thread:$0]  %s342, 128, %s339, %s328
        $region32: #{tpu_custom_call.1} parent=27 // pred_fallthru
          _
      $region28: #{tpu_custom_call.1} parent=5 // pred_fallthru
        _
      %p345 = scmp.le.s32.totalorder 2, %s11
      // Predicated region
      $region33: #{tpu_custom_call.1} parent=5 // pred_check
        %p346 = pneg %p345
      $region34: #{tpu_custom_call.1} parent=5 // pred_check_branch
        %348 = sbr.rel (%p346) target = $region36
      $region35: #{tpu_custom_call.1} parent=5 // pred_region
        %s349 = ssub.s32 %s11, 2
        // Predicated region
        $region37: #{tpu_custom_call.1} parent=35 // pred_check
          %p350 = pneg %p92
        $region38: #{tpu_custom_call.1} parent=35 // pred_check_branch
          %352 = sbr.rel (%p350) target = $region40
        $region39: #{tpu_custom_call.1} parent=35 // pred_region
          %s353 = sand.u32 %s77, 1
          %s354 = scalar_lea.sflag [#allocation3], %s353
          %s355 = sand.u32 %s77, 1
          %s356 = smul.addr %s355, 8
          %s357 = scalar_lea.vmem [#allocation2], %s356
          %358 = dma.done %s354, 128
        $region40: #{tpu_custom_call.1} parent=35 // pred_fallthru
          _
      $region36: #{tpu_custom_call.1} parent=5 // pred_fallthru
        _
    $region6: #{tpu_custom_call.1} parent=1 // loop_footer
      %s15 = sadd.s32 1, %s11
    $region7: #{tpu_custom_call.1} parent=1 // loop_footer_branch
      %10 = sbr.rel target = $region3
    $region8: #{tpu_custom_call.1} parent=1 // loop_exit
      _
    %359 = vsyncpa [#allocation3], 1
    %s360 = scalar_lea.sflag [#allocation3], 1
    %361 = vsyncpa %s360, 1

</llo_original>
